<compile_context>
chip_gen: v5e
topology: v5e:2x2
jax: 0.10.0
libtpu: 0.0.40
codegen_flags: <defaults>
</compile_context>

<pallas_src>
import functools

import jax
import jax.numpy as jnp
from jax.experimental import pallas as pl
from jax.experimental.pallas import tpu as pltpu


def _deep_critic_kernel(x_ref,
                        w1_ref, b1_ref,
                        w2_ref, b2_ref,
                        w3_ref, b3_ref,
                        w4_ref, b4_ref,
                        o_ref):
    # fc1 + relu : x arrives bf16 from the host, f32 accumulate on the MXU,
    # bias+ReLU in f32 on the VPU.
    h = jnp.dot(x_ref[...], w1_ref[...], preferred_element_type=jnp.float32)
    h = jnp.maximum(h + b1_ref[...], 0.0)
    # fc2 + relu
    h = jnp.dot(h.astype(jnp.bfloat16), w2_ref[...],
                preferred_element_type=jnp.float32)
    h = jnp.maximum(h + b2_ref[...], 0.0)
    # fc3 + relu
    h = jnp.dot(h.astype(jnp.bfloat16), w3_ref[...],
                preferred_element_type=jnp.float32)
    h = jnp.maximum(h + b3_ref[...], 0.0)
    # fc4 (128 -> 1): VPU multiply + lane reduction (no MXU drain for a single
    # output column), then a skinny (tile_b,1) -> (1,tile_b) transpose on the
    # XLU so the output store is lane-dense (unmasked vst) instead of width-1.
    v = jnp.sum(h * w4_ref[...], axis=-1, keepdims=True) + b4_ref[...]  # (tile_b, 1)
    o_ref[...] = v.T.astype(o_ref.dtype)                                # (1, tile_b)


def _round_up(x, m):
    return ((x + m - 1) // m) * m


def _pick_tile_b(batch):
    # Small batches: one 8-aligned full-extent tile (avoids padding B=8 to 128).
    # Large batches: 512-row tiles (256-aligned for the v6e/v7x MXU, amortizes
    # per-grid-step overhead, and guarantees >= 2 grid steps for megacore).
    b8 = max(_round_up(batch, 8), 8)
    return b8 if b8 <= 512 else 512


@functools.partial(jax.jit, static_argnames=("tile_b",))
def deep_critic_forward(x, params, *, tile_b=None):
    """x: (B, n_features) float32 -> (B, 1) float32."""
    w1, b1, w2, b2, w3, b3, w4, b4 = params
    B, K = x.shape

    if tile_b is None:
        tile_b = _pick_tile_b(B)
    B_pad = _round_up(B, tile_b)
    nb = B_pad // tile_b

    # x is the only per-grid-step HBM stream: pad the batch only when needed
    # and ship it as bf16 (the pad+cast fuse into one XLA pass; padded rows are
    # exact zeros and are sliced off below).  K is never padded -- the block
    # shapes use the full K extent.
    x_p = x if B_pad == B else jnp.pad(x, ((0, B_pad - B), (0, 0)))
    x_p = x_p.astype(jnp.bfloat16)
    w1_b = w1.astype(jnp.bfloat16)
    w2_b = w2.astype(jnp.bfloat16)
    w3_b = w3.astype(jnp.bfloat16)
    w4_row = w4.T.astype(jnp.float32)          # (1, 128): used on the VPU

    flops = 2 * B_pad * (K * 512 + 512 * 256 + 256 * 128 + 128)
    bytes_accessed = (
        x_p.size * 2                                    # bf16 activation stream
        + (w1_b.size + w2_b.size + w3_b.size) * 2       # bf16 weights (read once)
        + w4_row.size * 4
        + (b1.size + b2.size + b3.size + b4.size) * 4
        + B_pad * 4)                                    # f32 output

    # Weights / biases: constant index_map -> DMA'd once, VMEM-resident across
    # all grid steps; Buffered(1) drops the pointless second (double) buffer.
    const = lambda i: (0, 0)
    resident = functools.partial(pl.BlockSpec, index_map=const,
                                 pipeline_mode=pl.Buffered(1))

    # VMEM budget: double-buffered bf16 x tile + single-buffered bf16 weights
    # + f32 biases/intermediates/output.  Clamp to v7x's 64 MiB physical VMEM.
    vmem_needed = (2 * tile_b * K * 2
                   + (K * 512 + 512 * 256 + 256 * 128) * 2
                   + (512 + 256 + 128 + 128 + 1) * 4
                   + tile_b * (512 + 256 + 128) * 4
                   + 2 * tile_b * 4)
    vmem_limit = int(min(max(32 * 1024 * 1024, vmem_needed * 3 // 2),
                         64 * 1024 * 1024))

    out_p = pl.pallas_call(
        _deep_critic_kernel,
        out_shape=jax.ShapeDtypeStruct((1, B_pad), jnp.float32),
        grid=(nb,),
        in_specs=[
            pl.BlockSpec((tile_b, K), lambda i: (i, 0)),        # bf16 x tile
            resident(block_shape=(K, 512)),  resident(block_shape=(1, 512)),
            resident(block_shape=(512, 256)), resident(block_shape=(1, 256)),
            resident(block_shape=(256, 128)), resident(block_shape=(1, 128)),
            resident(block_shape=(1, 128)),   resident(block_shape=(1, 1)),
        ],
        out_specs=pl.BlockSpec((1, tile_b), lambda i: (0, i)),  # lane-dense out
        compiler_params=pltpu.CompilerParams(
            dimension_semantics=("parallel",),
            vmem_limit_bytes=vmem_limit),
        cost_estimate=pl.CostEstimate(
            flops=flops, transcendentals=0, bytes_accessed=bytes_accessed),
    )(x_p, w1_b, b1, w2_b, b2, w3_b, b3, w4_row, b4)

    return out_p.reshape(B_pad, 1)[:B]


def init_deep_critic_params(key, n_features):
    """Deterministic init matching nn.Linear's default U(-1/sqrt(fan_in), +)."""
    dims = [(n_features, 512), (512, 256), (256, 128), (128, 1)]
    params = []
    for (fan_in, fan_out) in dims:
        key, kw, kb = jax.random.split(key, 3)
        bound = 1.0 / jnp.sqrt(jnp.float32(fan_in))
        w = jax.random.uniform(kw, (fan_in, fan_out), jnp.float32, -bound, bound)
        b = jax.random.uniform(kb, (1, fan_out), jnp.float32, -bound, bound)
        params.extend([w, b])
    return tuple(params)


def deep_critic_ref_f32(x, params):
    """Plain-JAX f32 reference (module semantics)."""
    w1, b1, w2, b2, w3, b3, w4, b4 = params
    h = jnp.maximum(x @ w1 + b1, 0.0)
    h = jnp.maximum(h @ w2 + b2, 0.0)
    h = jnp.maximum(h @ w3 + b3, 0.0)
    return h @ w4 + b4


def deep_critic_ref_bf16(x, params):
    """Reference with the same bf16-operand / f32-accumulate precision policy."""
    w1, b1, w2, b2, w3, b3, w4, b4 = params
    bf = jnp.bfloat16
    h = jnp.maximum(jnp.dot(x.astype(bf), w1.astype(bf),
                            preferred_element_type=jnp.float32) + b1, 0.0)
    h = jnp.maximum(jnp.dot(h.astype(bf), w2.astype(bf),
                            preferred_element_type=jnp.float32) + b2, 0.0)
    h = jnp.maximum(jnp.dot(h.astype(bf), w3.astype(bf),
                            preferred_element_type=jnp.float32) + b3, 0.0)
    return h @ w4 + b4


if __name__ == "__main__":
    key = jax.random.PRNGKey(0)
    n_features = 32
    batch = 8

    kx, kp = jax.random.split(key)
    x = jax.random.normal(kx, (batch, n_features), jnp.float32)
    params = init_deep_critic_params(kp, n_features)

    out = deep_critic_forward(x, params)
    out = jax.block_until_ready(out)
    assert out.shape == (batch, 1), out.shape

    # Tight check vs a matched-precision (bf16-operand) reference.
    ref_bf16 = deep_critic_ref_bf16(x, params)
    assert jnp.allclose(out, ref_bf16, atol=2e-3, rtol=2e-3), (
        f"max err vs bf16 ref {jnp.max(jnp.abs(out - ref_bf16))}")

    # Loose sanity check vs the pure-f32 module reference.
    ref_f32 = deep_critic_ref_f32(x, params)
    assert jnp.allclose(out, ref_f32, atol=5e-2, rtol=5e-2), (
        f"max err vs f32 ref {jnp.max(jnp.abs(out - ref_f32))}")

    print("KERNEL_OK")
</pallas_src>

<mosaic_0001>
module attributes {stable_mosaic.version = 11 : i64} {
  func.func @_deep_critic_kernel(%arg0: i32, %arg1: memref<8x32xbf16, #tpu.memory_space<vmem>>, %arg2: memref<32x512xbf16, #tpu.memory_space<vmem>>, %arg3: memref<1x512xf32, #tpu.memory_space<vmem>>, %arg4: memref<512x256xbf16, #tpu.memory_space<vmem>>, %arg5: memref<1x256xf32, #tpu.memory_space<vmem>>, %arg6: memref<256x128xbf16, #tpu.memory_space<vmem>>, %arg7: memref<1x128xf32, #tpu.memory_space<vmem>>, %arg8: memref<1x128xf32, #tpu.memory_space<vmem>>, %arg9: memref<1x1xf32, #tpu.memory_space<vmem>>, %arg10: memref<1x8xf32, #tpu.memory_space<vmem>>) attributes {dimension_semantics = [#tpu.dimension_semantics<parallel>], iteration_bounds = array<i64: 1>, scalar_prefetch = 0 : i64, scratch_operands = 0 : i64, tpu.core_type = #tpu.core_type<tc>, window_params = [{transform_indices = @transform_0, window_bounds = array<i64: 8, 32>}, {pipeline_mode = #tpu.pipeline_mode<synchronous>, transform_indices = @transform_1, window_bounds = array<i64: 32, 512>}, {pipeline_mode = #tpu.pipeline_mode<synchronous>, transform_indices = @transform_2, window_bounds = array<i64: 1, 512>}, {pipeline_mode = #tpu.pipeline_mode<synchronous>, transform_indices = @transform_3, window_bounds = array<i64: 512, 256>}, {pipeline_mode = #tpu.pipeline_mode<synchronous>, transform_indices = @transform_4, window_bounds = array<i64: 1, 256>}, {pipeline_mode = #tpu.pipeline_mode<synchronous>, transform_indices = @transform_5, window_bounds = array<i64: 256, 128>}, {pipeline_mode = #tpu.pipeline_mode<synchronous>, transform_indices = @transform_6, window_bounds = array<i64: 1, 128>}, {pipeline_mode = #tpu.pipeline_mode<synchronous>, transform_indices = @transform_7, window_bounds = array<i64: 1, 128>}, {pipeline_mode = #tpu.pipeline_mode<synchronous>, transform_indices = @transform_8, window_bounds = array<i64: 1, 1>}, {transform_indices = @transform_9, window_bounds = array<i64: 1, 8>}]} {
    %c0 = arith.constant 0 : index
    %c0_0 = arith.constant 0 : index
    %0 = vector.load %arg1[%c0, %c0_0] : memref<8x32xbf16, #tpu.memory_space<vmem>>, vector<8x32xbf16>
    %c0_1 = arith.constant 0 : index
    %c0_2 = arith.constant 0 : index
    %1 = vector.load %arg2[%c0_1, %c0_2] : memref<32x512xbf16, #tpu.memory_space<vmem>>, vector<32x512xbf16>
    %cst = arith.constant dense<0.000000e+00> : vector<8x512xf32>
    %2 = tpu.matmul %0, %1, %cst {dimension_numbers = #tpu.dot_dimension_numbers<[1], [0], [0], [1], [0, 0, 1, 1], [], []>} : vector<8x32xbf16>, vector<32x512xbf16>, vector<8x512xf32> -> vector<8x512xf32>
    %c0_3 = arith.constant 0 : index
    %c0_4 = arith.constant 0 : index
    %3 = vector.load %arg3[%c0_3, %c0_4] : memref<1x512xf32, #tpu.memory_space<vmem>>, vector<1x512xf32>
    %4 = vector.broadcast %3 : vector<1x512xf32> to vector<8x512xf32>
    %5 = arith.addf %2, %4 : vector<8x512xf32>
    %cst_5 = arith.constant 0.000000e+00 : f32
    %6 = vector.broadcast %cst_5 : f32 to vector<8x512xf32>
    %7 = arith.maximumf %5, %6 : vector<8x512xf32>
    %8 = arith.truncf %7 : vector<8x512xf32> to vector<8x512xbf16>
    %c0_6 = arith.constant 0 : index
    %c0_7 = arith.constant 0 : index
    %9 = vector.load %arg4[%c0_6, %c0_7] : memref<512x256xbf16, #tpu.memory_space<vmem>>, vector<512x256xbf16>
    %cst_8 = arith.constant dense<0.000000e+00> : vector<8x256xf32>
    %10 = tpu.matmul %8, %9, %cst_8 {dimension_numbers = #tpu.dot_dimension_numbers<[1], [0], [0], [1], [0, 0, 1, 1], [], []>} : vector<8x512xbf16>, vector<512x256xbf16>, vector<8x256xf32> -> vector<8x256xf32>
    %c0_9 = arith.constant 0 : index
    %c0_10 = arith.constant 0 : index
    %11 = vector.load %arg5[%c0_9, %c0_10] : memref<1x256xf32, #tpu.memory_space<vmem>>, vector<1x256xf32>
    %12 = vector.broadcast %11 : vector<1x256xf32> to vector<8x256xf32>
    %13 = arith.addf %10, %12 : vector<8x256xf32>
    %cst_11 = arith.constant 0.000000e+00 : f32
    %14 = vector.broadcast %cst_11 : f32 to vector<8x256xf32>
    %15 = arith.maximumf %13, %14 : vector<8x256xf32>
    %16 = arith.truncf %15 : vector<8x256xf32> to vector<8x256xbf16>
    %c0_12 = arith.constant 0 : index
    %c0_13 = arith.constant 0 : index
    %17 = vector.load %arg6[%c0_12, %c0_13] : memref<256x128xbf16, #tpu.memory_space<vmem>>, vector<256x128xbf16>
    %cst_14 = arith.constant dense<0.000000e+00> : vector<8x128xf32>
    %18 = tpu.matmul %16, %17, %cst_14 {dimension_numbers = #tpu.dot_dimension_numbers<[1], [0], [0], [1], [0, 0, 1, 1], [], []>} : vector<8x256xbf16>, vector<256x128xbf16>, vector<8x128xf32> -> vector<8x128xf32>
    %c0_15 = arith.constant 0 : index
    %c0_16 = arith.constant 0 : index
    %19 = vector.load %arg7[%c0_15, %c0_16] : memref<1x128xf32, #tpu.memory_space<vmem>>, vector<1x128xf32>
    %20 = vector.broadcast %19 : vector<1x128xf32> to vector<8x128xf32>
    %21 = arith.addf %18, %20 : vector<8x128xf32>
    %cst_17 = arith.constant 0.000000e+00 : f32
    %22 = vector.broadcast %cst_17 : f32 to vector<8x128xf32>
    %23 = arith.maximumf %21, %22 : vector<8x128xf32>
    %c0_18 = arith.constant 0 : index
    %c0_19 = arith.constant 0 : index
    %24 = vector.load %arg8[%c0_18, %c0_19] : memref<1x128xf32, #tpu.memory_space<vmem>>, vector<1x128xf32>
    %25 = vector.broadcast %24 : vector<1x128xf32> to vector<8x128xf32>
    %26 = arith.mulf %23, %25 : vector<8x128xf32>
    %cst_20 = arith.constant dense<0.000000e+00> : vector<8xf32>
    %27 = vector.multi_reduction <add>, %26, %cst_20 [1] : vector<8x128xf32> to vector<8xf32>
    %28 = vector.shape_cast %27 : vector<8xf32> to vector<8x1xf32>
    %c0_21 = arith.constant 0 : index
    %c0_22 = arith.constant 0 : index
    %29 = vector.load %arg9[%c0_21, %c0_22] : memref<1x1xf32, #tpu.memory_space<vmem>>, vector<1x1xf32>
    %30 = vector.broadcast %29 : vector<1x1xf32> to vector<8x1xf32>
    %31 = arith.addf %28, %30 : vector<8x1xf32>
    %32 = tpu.transpose %31, [1, 0] : vector<8x1xf32> -> vector<1x8xf32>
    %c0_23 = arith.constant 0 : index
    %c0_24 = arith.constant 0 : index
    %33 = vector.load %arg10[%c0_23, %c0_24] : memref<1x8xf32, #tpu.memory_space<vmem>>, vector<1x8xf32>
    tpu.vector_store %arg10[%c0_23, %c0_24], %32 {strides = array<i32>} : memref<1x8xf32, #tpu.memory_space<vmem>>, vector<1x8xf32>,
    return
  }
  func.func @transform_0(%arg0: i32) -> (i32, i32) {
    %c0_i32 = arith.constant 0 : i32
    %c0_i32_0 = arith.constant 0 : i32
    return %arg0, %c0_i32 : i32, i32
  }
  func.func @transform_1(%arg0: i32) -> (i32, i32) {
    %c0_i32 = arith.constant 0 : i32
    %c0_i32_0 = arith.constant 0 : i32
    %c0_i32_1 = arith.constant 0 : i32
    return %c0_i32, %c0_i32_0 : i32, i32
  }
  func.func @transform_2(%arg0: i32) -> (i32, i32) {
    %c0_i32 = arith.constant 0 : i32
    %c0_i32_0 = arith.constant 0 : i32
    %c0_i32_1 = arith.constant 0 : i32
    return %c0_i32, %c0_i32_0 : i32, i32
  }
  func.func @transform_3(%arg0: i32) -> (i32, i32) {
    %c0_i32 = arith.constant 0 : i32
    %c0_i32_0 = arith.constant 0 : i32
    %c0_i32_1 = arith.constant 0 : i32
    return %c0_i32, %c0_i32_0 : i32, i32
  }
  func.func @transform_4(%arg0: i32) -> (i32, i32) {
    %c0_i32 = arith.constant 0 : i32
    %c0_i32_0 = arith.constant 0 : i32
    %c0_i32_1 = arith.constant 0 : i32
    return %c0_i32, %c0_i32_0 : i32, i32
  }
  func.func @transform_5(%arg0: i32) -> (i32, i32) {
    %c0_i32 = arith.constant 0 : i32
    %c0_i32_0 = arith.constant 0 : i32
    %c0_i32_1 = arith.constant 0 : i32
    return %c0_i32, %c0_i32_0 : i32, i32
  }
  func.func @transform_6(%arg0: i32) -> (i32, i32) {
    %c0_i32 = arith.constant 0 : i32
    %c0_i32_0 = arith.constant 0 : i32
    %c0_i32_1 = arith.constant 0 : i32
    return %c0_i32, %c0_i32_0 : i32, i32
  }
  func.func @transform_7(%arg0: i32) -> (i32, i32) {
    %c0_i32 = arith.constant 0 : i32
    %c0_i32_0 = arith.constant 0 : i32
    %c0_i32_1 = arith.constant 0 : i32
    return %c0_i32, %c0_i32_0 : i32, i32
  }
  func.func @transform_8(%arg0: i32) -> (i32, i32) {
    %c0_i32 = arith.constant 0 : i32
    %c0_i32_0 = arith.constant 0 : i32
    %c0_i32_1 = arith.constant 0 : i32
    return %c0_i32, %c0_i32_0 : i32, i32
  }
  func.func @transform_9(%arg0: i32) -> (i32, i32) {
    %c0_i32 = arith.constant 0 : i32
    %c0_i32_0 = arith.constant 0 : i32
    return %c0_i32, %arg0 : i32, i32
  }
}

</mosaic_0001>

<llo_original>
// kernel: deep_critic_forward.1
$region0: #{deep_critic_forward.1}
  #allocation0 [shape = 'u32[]', space=smem, size = 0x4, offset = 0x4, fixed_abs, tag = 'smem constant byte address 0x4 - core index']
  #allocation1 [shape = 'u32[72,128]{1,0:T(1,128)}', space=vmem, size = 0x9000, scoped, tag = 'internal scratch']
  #allocation2 [shape = 'f32[1,1]{1,0:T(1,128)S(1)}', space=vmem, size = 0x200, scoped, tag = 'scoped memory for deep_critic_forward.1']
  %s0 = inlined_call_operand.vmem [shape: bf16[8,32], index: 0, kind: input, shape index: {}]
  %s1 = inlined_call_operand.vmem [shape: bf16[32,512], index: 1, kind: input, shape index: {}]
  %s2 = inlined_call_operand.vmem [shape: f32[1,512], index: 2, kind: input, shape index: {}]
  %s3 = inlined_call_operand.vmem [shape: bf16[512,256], index: 3, kind: input, shape index: {}]
  %s4 = inlined_call_operand.vmem [shape: f32[1,256], index: 4, kind: input, shape index: {}]
  %s5 = inlined_call_operand.vmem [shape: bf16[256,128], index: 5, kind: input, shape index: {}]
  %s6 = inlined_call_operand.vmem [shape: f32[1,128], index: 6, kind: input, shape index: {}]
  %s7 = inlined_call_operand.vmem [shape: f32[1,128], index: 7, kind: input, shape index: {}]
  %s8 = inlined_call_operand.<no memory space> [shape: f32[1,1], index: 8, kind: input, shape index: {}]
  %s9 = inlined_call_operand.hbm [shape: f32[1,8], index: 9, kind: output, shape index: {}]
  %s10 = sld [smem:[#allocation0]]
  $region46: #{deep_critic_forward.1} parent=0
    _
  %s12 = ssub.s32 1, %s10
  %s13 = scalar_select 0, %s12, %s10
  %v14 = vstv %s8
  %15 = vst [vmem:[#allocation2] sm:$0x1] %v14
  $region1: #{deep_critic_forward.1} parent=0
    #allocation3 [shape = 'u8[512]{0}', space=vmem, size = 0x400, scoped, tag = 'output window, operand 0, single buffered']
    #allocation4 [shape = 's32[1]{0}', space=sflag, size = 0x4, scoped, tag = 'scoped memory for deep_critic_forward.1']
    %16 = vsyncpa [#allocation4], 0
    // Predicated region
    $region2: #{deep_critic_forward.1} parent=1 // pred_check
      _
    $region3: #{deep_critic_forward.1} parent=1 // pred_check_branch
      %18 = sbr.rel (0) target = $region5
    $region4: #{deep_critic_forward.1} parent=1 // pred_region
      _
    $region5: #{deep_critic_forward.1} parent=1 // pred_fallthru
      _
    // Predicated region
    $region6: #{deep_critic_forward.1} parent=1 // pred_check
      _
    $region7: #{deep_critic_forward.1} parent=1 // pred_check_branch
      %20 = sbr.rel (0) target = $region9
    $region8: #{deep_critic_forward.1} parent=1 // pred_region
      _
    $region9: #{deep_critic_forward.1} parent=1 // pred_fallthru
      _
    // Predicated region
    $region10: #{deep_critic_forward.1} parent=1 // pred_check
      _
    $region11: #{deep_critic_forward.1} parent=1 // pred_check_branch
      %22 = sbr.rel (0) target = $region13
    $region12: #{deep_critic_forward.1} parent=1 // pred_region
      _
    $region13: #{deep_critic_forward.1} parent=1 // pred_fallthru
      _
    // Predicated region
    $region14: #{deep_critic_forward.1} parent=1 // pred_check
      _
    $region15: #{deep_critic_forward.1} parent=1 // pred_check_branch
      %24 = sbr.rel (0) target = $region17
    $region16: #{deep_critic_forward.1} parent=1 // pred_region
      _
    $region17: #{deep_critic_forward.1} parent=1 // pred_fallthru
      _
    // Predicated region
    $region18: #{deep_critic_forward.1} parent=1 // pred_check
      _
    $region19: #{deep_critic_forward.1} parent=1 // pred_check_branch
      %26 = sbr.rel (0) target = $region21
    $region20: #{deep_critic_forward.1} parent=1 // pred_region
      _
    $region21: #{deep_critic_forward.1} parent=1 // pred_fallthru
      _
    // Predicated region
    $region22: #{deep_critic_forward.1} parent=1 // pred_check
      _
    $region23: #{deep_critic_forward.1} parent=1 // pred_check_branch
      %28 = sbr.rel (0) target = $region25
    $region24: #{deep_critic_forward.1} parent=1 // pred_region
      _
    $region25: #{deep_critic_forward.1} parent=1 // pred_fallthru
      _
    // Predicated region
    $region26: #{deep_critic_forward.1} parent=1 // pred_check
      _
    $region27: #{deep_critic_forward.1} parent=1 // pred_check_branch
      %30 = sbr.rel (0) target = $region29
    $region28: #{deep_critic_forward.1} parent=1 // pred_region
      _
    $region29: #{deep_critic_forward.1} parent=1 // pred_fallthru
      _
    // Predicated region
    $region30: #{deep_critic_forward.1} parent=1 // pred_check
      _
    $region31: #{deep_critic_forward.1} parent=1 // pred_check_branch
      %32 = sbr.rel (0) target = $region33
    $region32: #{deep_critic_forward.1} parent=1 // pred_region
      _
    $region33: #{deep_critic_forward.1} parent=1 // pred_fallthru
      _
    // Predicated region
    $region34: #{deep_critic_forward.1} parent=1 // pred_check
      _
    $region35: #{deep_critic_forward.1} parent=1 // pred_check_branch
      %34 = sbr.rel (0) target = $region37
    $region36: #{deep_critic_forward.1} parent=1 // pred_region
      _
    $region37: #{deep_critic_forward.1} parent=1 // pred_fallthru
      _
    %v36 = vld [vmem:[%s0] sm:$0xf]
    %v37 = vld [vmem:[%s1] sm:$0xff]
    %v38 = vld [vmem:[%s1 + $0x8] sm:$0xff]
    %v39 = vld [vmem:[%s1 + $0x10] sm:$0xff]
    %v40 = vld [vmem:[%s1 + $0x18] sm:$0xff]
    %v41 = vld [vmem:[%s1 + $0x20] sm:$0xff]
    %v42 = vld [vmem:[%s1 + $0x28] sm:$0xff]
    %v43 = vld [vmem:[%s1 + $0x30] sm:$0xff]
    %v44 = vld [vmem:[%s1 + $0x38] sm:$0xff]
    %v45 = vld [vmem:[%s2] sm:$0xf]
    %v47 = vperm.slane %v45, 0
    %v48 = vperm.slane %v45, 1
    %v49 = vperm.slane %v45, 2
    %v50 = vperm.slane %v45, 3
    %v63 = vunpack.c.l.b16 %v37
    %v64 = vunpack.c.h.b16 %v37
    %v65 = vunpack.c.l.b16 %v38
    %v66 = vunpack.c.h.b16 %v38
    %v67 = vunpack.c.l.b16 %v39
    %v68 = vunpack.c.h.b16 %v39
    %v69 = vunpack.c.l.b16 %v40
    %v70 = vunpack.c.h.b16 %v40
    %v71 = vunpack.c.l.b16 %v41
    %v72 = vunpack.c.h.b16 %v41
    %v73 = vunpack.c.l.b16 %v42
    %v74 = vunpack.c.h.b16 %v42
    %v75 = vunpack.c.l.b16 %v43
    %v76 = vunpack.c.h.b16 %v43
    %v77 = vunpack.c.l.b16 %v44
    %v78 = vunpack.c.h.b16 %v44
    %v79 = vpack.c.b16 %v67, %v63
    %v80 = vpack.c.b16 %v68, %v64
    %v81 = vpack.c.b16 %v69, %v65
    %v82 = vpack.c.b16 %v70, %v66
    %v83 = vpack.c.b16 %v75, %v71
    %v84 = vpack.c.b16 %v76, %v72
    %v85 = vpack.c.b16 %v77, %v73
    %v86 = vpack.c.b16 %v78, %v74
    %vm95 = vcmask 261120
    %v97 = vsel %vm95, %v36, 0
    %99 = vmatpush.bf16.msra.mxu0 0
    %100 = vmatpush.bf16.msra.mxu0 0
    %101 = vmatpush.bf16.msra.mxu0 0
    %102 = vmatpush.bf16.msra.mxu0 0
    %103 = vmatpush.bf16.msra.mxu0 0
    %104 = vmatpush.bf16.msra.mxu0 0
    %105 = vmatpush.bf16.msra.mxu0 %v83
    %106 = vmatpush.bf16.msra.mxu0 %v79
    %107 = vmatmul.bf16.gmra.mxu0 %v97
    %v108 = vpop.f32.mrf.mxu0
    %v109 = vadd.f32 %v47, %v108
    %v110 = vpop.f32.mrf.mxu0
    %111 = vdwg.mxu0
    %112 = vmatpush.bf16.msra.mxu0 0
    %113 = vmatpush.bf16.msra.mxu0 0
    %114 = vmatpush.bf16.msra.mxu0 0
    %115 = vmatpush.bf16.msra.mxu0 0
    %116 = vmatpush.bf16.msra.mxu0 0
    %117 = vmatpush.bf16.msra.mxu0 0
    %118 = vmatpush.bf16.msra.mxu0 %v84
    %119 = vmatpush.bf16.msra.mxu0 %v80
    %120 = vmatmul.bf16.gmra.mxu0 %v97
    %v121 = vpop.f32.mrf.mxu0
    %v122 = vadd.f32 %v48, %v121
    %v123 = vpop.f32.mrf.mxu0
    %124 = vdwg.mxu0
    %125 = vmatpush.bf16.msra.mxu0 0
    %126 = vmatpush.bf16.msra.mxu0 0
    %127 = vmatpush.bf16.msra.mxu0 0
    %128 = vmatpush.bf16.msra.mxu0 0
    %129 = vmatpush.bf16.msra.mxu0 0
    %130 = vmatpush.bf16.msra.mxu0 0
    %131 = vmatpush.bf16.msra.mxu0 %v85
    %132 = vmatpush.bf16.msra.mxu0 %v81
    %133 = vmatmul.bf16.gmra.mxu0 %v97
    %v134 = vpop.f32.mrf.mxu0
    %v135 = vadd.f32 %v49, %v134
    %v136 = vpop.f32.mrf.mxu0
    %137 = vdwg.mxu0
    %138 = vmatpush.bf16.msra.mxu0 0
    %139 = vmatpush.bf16.msra.mxu0 0
    %140 = vmatpush.bf16.msra.mxu0 0
    %141 = vmatpush.bf16.msra.mxu0 0
    %142 = vmatpush.bf16.msra.mxu0 0
    %143 = vmatpush.bf16.msra.mxu0 0
    %144 = vmatpush.bf16.msra.mxu0 %v86
    %145 = vmatpush.bf16.msra.mxu0 %v82
    %146 = vmatmul.bf16.gmra.mxu0 %v97
    %v147 = vpop.f32.mrf.mxu0
    %v148 = vadd.f32 %v50, %v147
    %v149 = vpop.f32.mrf.mxu0
    %150 = vdwg.mxu0
    %v151 = vmax.f32 %v109, 0.0
    %v152 = vmax.f32 %v122, 0.0
    %v153 = vmax.f32 %v135, 0.0
    %v154 = vmax.f32 %v148, 0.0
    %v155 = vpack.c.bf16 %v151, %v151
    %v156 = vpack.c.bf16 %v152, %v152
    %v157 = vpack.c.bf16 %v153, %v153
    %v158 = vpack.c.bf16 %v154, %v154
    %v159 = vld [vmem:[%s3] sm:$0xff]
    %v160 = vld [vmem:[%s3 + $0x8] sm:$0xff]
    %v161 = vld [vmem:[%s3 + $0x10] sm:$0xff]
    %v162 = vld [vmem:[%s3 + $0x18] sm:$0xff]
    %v163 = vld [vmem:[%s3 + $0x20] sm:$0xff]
    %v164 = vld [vmem:[%s3 + $0x28] sm:$0xff]
    %v165 = vld [vmem:[%s3 + $0x30] sm:$0xff]
    %v166 = vld [vmem:[%s3 + $0x38] sm:$0xff]
    %v167 = vld [vmem:[%s3 + $0x40] sm:$0xff]
    %v168 = vld [vmem:[%s3 + $0x48] sm:$0xff]
    %v169 = vld [vmem:[%s3 + $0x50] sm:$0xff]
    %v170 = vld [vmem:[%s3 + $0x58] sm:$0xff]
    %v171 = vld [vmem:[%s3 + $0x60] sm:$0xff]
    %v172 = vld [vmem:[%s3 + $0x68] sm:$0xff]
    %v173 = vld [vmem:[%s3 + $0x70] sm:$0xff]
    %v174 = vld [vmem:[%s3 + $0x78] sm:$0xff]
    %v175 = vld [vmem:[%s3 + $0x80] sm:$0xff]
    %v176 = vld [vmem:[%s3 + $0x88] sm:$0xff]
    %v177 = vld [vmem:[%s3 + $0x90] sm:$0xff]
    %v178 = vld [vmem:[%s3 + $0x98] sm:$0xff]
    %v179 = vld [vmem:[%s3 + $0xa0] sm:$0xff]
    %v180 = vld [vmem:[%s3 + $0xa8] sm:$0xff]
    %v181 = vld [vmem:[%s3 + $0xb0] sm:$0xff]
    %v182 = vld [vmem:[%s3 + $0xb8] sm:$0xff]
    %v183 = vld [vmem:[%s3 + $0xc0] sm:$0xff]
    %v184 = vld [vmem:[%s3 + $0xc8] sm:$0xff]
    %v185 = vld [vmem:[%s3 + $0xd0] sm:$0xff]
    %v186 = vld [vmem:[%s3 + $0xd8] sm:$0xff]
    %v187 = vld [vmem:[%s3 + $0xe0] sm:$0xff]
    %v188 = vld [vmem:[%s3 + $0xe8] sm:$0xff]
    %v189 = vld [vmem:[%s3 + $0xf0] sm:$0xff]
    %v190 = vld [vmem:[%s3 + $0xf8] sm:$0xff]
    %v191 = vld [vmem:[%s3 + $0x100] sm:$0xff]
    %v192 = vld [vmem:[%s3 + $0x108] sm:$0xff]
    %v193 = vld [vmem:[%s3 + $0x110] sm:$0xff]
    %v194 = vld [vmem:[%s3 + $0x118] sm:$0xff]
    %v195 = vld [vmem:[%s3 + $0x120] sm:$0xff]
    %v196 = vld [vmem:[%s3 + $0x128] sm:$0xff]
    %v197 = vld [vmem:[%s3 + $0x130] sm:$0xff]
    %v198 = vld [vmem:[%s3 + $0x138] sm:$0xff]
    %v199 = vld [vmem:[%s3 + $0x140] sm:$0xff]
    %v200 = vld [vmem:[%s3 + $0x148] sm:$0xff]
    %v201 = vld [vmem:[%s3 + $0x150] sm:$0xff]
    %v202 = vld [vmem:[%s3 + $0x158] sm:$0xff]
    %v203 = vld [vmem:[%s3 + $0x160] sm:$0xff]
    %v204 = vld [vmem:[%s3 + $0x168] sm:$0xff]
    %v205 = vld [vmem:[%s3 + $0x170] sm:$0xff]
    %v206 = vld [vmem:[%s3 + $0x178] sm:$0xff]
    %v207 = vld [vmem:[%s3 + $0x180] sm:$0xff]
    %v208 = vld [vmem:[%s3 + $0x188] sm:$0xff]
    %v209 = vld [vmem:[%s3 + $0x190] sm:$0xff]
    %v210 = vld [vmem:[%s3 + $0x198] sm:$0xff]
    %v211 = vld [vmem:[%s3 + $0x1a0] sm:$0xff]
    %v212 = vld [vmem:[%s3 + $0x1a8] sm:$0xff]
    %v213 = vld [vmem:[%s3 + $0x1b0] sm:$0xff]
    %v214 = vld [vmem:[%s3 + $0x1b8] sm:$0xff]
    %v215 = vld [vmem:[%s3 + $0x1c0] sm:$0xff]
    %v216 = vld [vmem:[%s3 + $0x1c8] sm:$0xff]
    %v217 = vld [vmem:[%s3 + $0x1d0] sm:$0xff]
    %v218 = vld [vmem:[%s3 + $0x1d8] sm:$0xff]
    %v219 = vld [vmem:[%s3 + $0x1e0] sm:$0xff]
    %v220 = vld [vmem:[%s3 + $0x1e8] sm:$0xff]
    %v221 = vld [vmem:[%s3 + $0x1f0] sm:$0xff]
    %v222 = vld [vmem:[%s3 + $0x1f8] sm:$0xff]
    %v223 = vld [vmem:[%s4] sm:$0x3]
    %v225 = vperm.slane %v223, 0
    %v226 = vperm.slane %v223, 1
    %v293 = vunpack.c.l.b16 %v159
    %v294 = vunpack.c.h.b16 %v159
    %v295 = vunpack.c.l.b16 %v160
    %v296 = vunpack.c.h.b16 %v160
    %v297 = vunpack.c.l.b16 %v161
    %v298 = vunpack.c.h.b16 %v161
    %v299 = vunpack.c.l.b16 %v162
    %v300 = vunpack.c.h.b16 %v162
    %v301 = vunpack.c.l.b16 %v163
    %v302 = vunpack.c.h.b16 %v163
    %v303 = vunpack.c.l.b16 %v164
    %v304 = vunpack.c.h.b16 %v164
    %v305 = vunpack.c.l.b16 %v165
    %v306 = vunpack.c.h.b16 %v165
    %v307 = vunpack.c.l.b16 %v166
    %v308 = vunpack.c.h.b16 %v166
    %v309 = vunpack.c.l.b16 %v167
    %v310 = vunpack.c.h.b16 %v167
    %v311 = vunpack.c.l.b16 %v168
    %v312 = vunpack.c.h.b16 %v168
    %v313 = vunpack.c.l.b16 %v169
    %v314 = vunpack.c.h.b16 %v169
    %v315 = vunpack.c.l.b16 %v170
    %v316 = vunpack.c.h.b16 %v170
    %v317 = vunpack.c.l.b16 %v171
    %v318 = vunpack.c.h.b16 %v171
    %v319 = vunpack.c.l.b16 %v172
    %v320 = vunpack.c.h.b16 %v172
    %v321 = vunpack.c.l.b16 %v173
    %v322 = vunpack.c.h.b16 %v173
    %v323 = vunpack.c.l.b16 %v174
    %v324 = vunpack.c.h.b16 %v174
    %v325 = vunpack.c.l.b16 %v175
    %v326 = vunpack.c.h.b16 %v175
    %v327 = vunpack.c.l.b16 %v176
    %v328 = vunpack.c.h.b16 %v176
    %v329 = vunpack.c.l.b16 %v177
    %v330 = vunpack.c.h.b16 %v177
    %v331 = vunpack.c.l.b16 %v178
    %v332 = vunpack.c.h.b16 %v178
    %v333 = vunpack.c.l.b16 %v179
    %v334 = vunpack.c.h.b16 %v179
    %v335 = vunpack.c.l.b16 %v180
    %v336 = vunpack.c.h.b16 %v180
    %v337 = vunpack.c.l.b16 %v181
    %v338 = vunpack.c.h.b16 %v181
    %v339 = vunpack.c.l.b16 %v182
    %v340 = vunpack.c.h.b16 %v182
    %v341 = vunpack.c.l.b16 %v183
    %v342 = vunpack.c.h.b16 %v183
    %v343 = vunpack.c.l.b16 %v184
    %v344 = vunpack.c.h.b16 %v184
    %v345 = vunpack.c.l.b16 %v185
    %v346 = vunpack.c.h.b16 %v185
    %v347 = vunpack.c.l.b16 %v186
    %v348 = vunpack.c.h.b16 %v186
    %v349 = vunpack.c.l.b16 %v187
    %v350 = vunpack.c.h.b16 %v187
    %v351 = vunpack.c.l.b16 %v188
    %v352 = vunpack.c.h.b16 %v188
    %v353 = vunpack.c.l.b16 %v189
    %v354 = vunpack.c.h.b16 %v189
    %v355 = vunpack.c.l.b16 %v190
    %v356 = vunpack.c.h.b16 %v190
    %v357 = vunpack.c.l.b16 %v191
    %v358 = vunpack.c.h.b16 %v191
    %v359 = vunpack.c.l.b16 %v192
    %v360 = vunpack.c.h.b16 %v192
    %v361 = vunpack.c.l.b16 %v193
    %v362 = vunpack.c.h.b16 %v193
    %v363 = vunpack.c.l.b16 %v194
    %v364 = vunpack.c.h.b16 %v194
    %v365 = vunpack.c.l.b16 %v195
    %v366 = vunpack.c.h.b16 %v195
    %v367 = vunpack.c.l.b16 %v196
    %v368 = vunpack.c.h.b16 %v196
    %v369 = vunpack.c.l.b16 %v197
    %v370 = vunpack.c.h.b16 %v197
    %v371 = vunpack.c.l.b16 %v198
    %v372 = vunpack.c.h.b16 %v198
    %v373 = vunpack.c.l.b16 %v199
    %v374 = vunpack.c.h.b16 %v199
    %v375 = vunpack.c.l.b16 %v200
    %v376 = vunpack.c.h.b16 %v200
    %v377 = vunpack.c.l.b16 %v201
    %v378 = vunpack.c.h.b16 %v201
    %v379 = vunpack.c.l.b16 %v202
    %v380 = vunpack.c.h.b16 %v202
    %v381 = vunpack.c.l.b16 %v203
    %v382 = vunpack.c.h.b16 %v203
    %v383 = vunpack.c.l.b16 %v204
    %v384 = vunpack.c.h.b16 %v204
    %v385 = vunpack.c.l.b16 %v205
    %v386 = vunpack.c.h.b16 %v205
    %v387 = vunpack.c.l.b16 %v206
    %v388 = vunpack.c.h.b16 %v206
    %v389 = vunpack.c.l.b16 %v207
    %v390 = vunpack.c.h.b16 %v207
    %v391 = vunpack.c.l.b16 %v208
    %v392 = vunpack.c.h.b16 %v208
    %v393 = vunpack.c.l.b16 %v209
    %v394 = vunpack.c.h.b16 %v209
    %v395 = vunpack.c.l.b16 %v210
    %v396 = vunpack.c.h.b16 %v210
    %v397 = vunpack.c.l.b16 %v211
    %v398 = vunpack.c.h.b16 %v211
    %v399 = vunpack.c.l.b16 %v212
    %v400 = vunpack.c.h.b16 %v212
    %v401 = vunpack.c.l.b16 %v213
    %v402 = vunpack.c.h.b16 %v213
    %v403 = vunpack.c.l.b16 %v214
    %v404 = vunpack.c.h.b16 %v214
    %v405 = vunpack.c.l.b16 %v215
    %v406 = vunpack.c.h.b16 %v215
    %v407 = vunpack.c.l.b16 %v216
    %v408 = vunpack.c.h.b16 %v216
    %v409 = vunpack.c.l.b16 %v217
    %v410 = vunpack.c.h.b16 %v217
    %v411 = vunpack.c.l.b16 %v218
    %v412 = vunpack.c.h.b16 %v218
    %v413 = vunpack.c.l.b16 %v219
    %v414 = vunpack.c.h.b16 %v219
    %v415 = vunpack.c.l.b16 %v220
    %v416 = vunpack.c.h.b16 %v220
    %v417 = vunpack.c.l.b16 %v221
    %v418 = vunpack.c.h.b16 %v221
    %v419 = vunpack.c.l.b16 %v222
    %v420 = vunpack.c.h.b16 %v222
    %v421 = vpack.c.b16 %v295, %v293
    %v422 = vpack.c.b16 %v296, %v294
    %v423 = vpack.c.b16 %v299, %v297
    %v424 = vpack.c.b16 %v300, %v298
    %v425 = vpack.c.b16 %v303, %v301
    %v426 = vpack.c.b16 %v304, %v302
    %v427 = vpack.c.b16 %v307, %v305
    %v428 = vpack.c.b16 %v308, %v306
    %v429 = vpack.c.b16 %v311, %v309
    %v430 = vpack.c.b16 %v312, %v310
    %v431 = vpack.c.b16 %v315, %v313
    %v432 = vpack.c.b16 %v316, %v314
    %v433 = vpack.c.b16 %v319, %v317
    %v434 = vpack.c.b16 %v320, %v318
    %v435 = vpack.c.b16 %v323, %v321
    %v436 = vpack.c.b16 %v324, %v322
    %v437 = vpack.c.b16 %v327, %v325
    %v438 = vpack.c.b16 %v328, %v326
    %v439 = vpack.c.b16 %v331, %v329
    %v440 = vpack.c.b16 %v332, %v330
    %v441 = vpack.c.b16 %v335, %v333
    %v442 = vpack.c.b16 %v336, %v334
    %v443 = vpack.c.b16 %v339, %v337
    %v444 = vpack.c.b16 %v340, %v338
    %v445 = vpack.c.b16 %v343, %v341
    %v446 = vpack.c.b16 %v344, %v342
    %v447 = vpack.c.b16 %v347, %v345
    %v448 = vpack.c.b16 %v348, %v346
    %v449 = vpack.c.b16 %v351, %v349
    %v450 = vpack.c.b16 %v352, %v350
    %v451 = vpack.c.b16 %v355, %v353
    %v452 = vpack.c.b16 %v356, %v354
    %v453 = vpack.c.b16 %v359, %v357
    %v454 = vpack.c.b16 %v360, %v358
    %v455 = vpack.c.b16 %v363, %v361
    %v456 = vpack.c.b16 %v364, %v362
    %v457 = vpack.c.b16 %v367, %v365
    %v458 = vpack.c.b16 %v368, %v366
    %v459 = vpack.c.b16 %v371, %v369
    %v460 = vpack.c.b16 %v372, %v370
    %v461 = vpack.c.b16 %v375, %v373
    %v462 = vpack.c.b16 %v376, %v374
    %v463 = vpack.c.b16 %v379, %v377
    %v464 = vpack.c.b16 %v380, %v378
    %v465 = vpack.c.b16 %v383, %v381
    %v466 = vpack.c.b16 %v384, %v382
    %v467 = vpack.c.b16 %v387, %v385
    %v468 = vpack.c.b16 %v388, %v386
    %v469 = vpack.c.b16 %v391, %v389
    %v470 = vpack.c.b16 %v392, %v390
    %v471 = vpack.c.b16 %v395, %v393
    %v472 = vpack.c.b16 %v396, %v394
    %v473 = vpack.c.b16 %v399, %v397
    %v474 = vpack.c.b16 %v400, %v398
    %v475 = vpack.c.b16 %v403, %v401
    %v476 = vpack.c.b16 %v404, %v402
    %v477 = vpack.c.b16 %v407, %v405
    %v478 = vpack.c.b16 %v408, %v406
    %v479 = vpack.c.b16 %v411, %v409
    %v480 = vpack.c.b16 %v412, %v410
    %v481 = vpack.c.b16 %v415, %v413
    %v482 = vpack.c.b16 %v416, %v414
    %v483 = vpack.c.b16 %v419, %v417
    %v484 = vpack.c.b16 %v420, %v418
    %549 = vmatpush.bf16.msra.mxu0 %v435
    %550 = vmatpush.bf16.msra.mxu0 %v433
    %551 = vmatpush.bf16.msra.mxu0 %v431
    %552 = vmatpush.bf16.msra.mxu0 %v429
    %553 = vmatpush.bf16.msra.mxu0 %v427
    %554 = vmatpush.bf16.msra.mxu0 %v425
    %555 = vmatpush.bf16.msra.mxu0 %v423
    %556 = vmatpush.bf16.msra.mxu0 %v421
    %557 = vmatmul.bf16.gmra.mxu0 %v155
    %v558 = vpop.f32.mrf.mxu0
    %v559 = vadd.f32 %v225, %v558
    %v560 = vpop.f32.mrf.mxu0
    %561 = vdwg.mxu0
    %562 = vmatpush.bf16.msra.mxu0 %v451
    %563 = vmatpush.bf16.msra.mxu0 %v449
    %564 = vmatpush.bf16.msra.mxu0 %v447
    %565 = vmatpush.bf16.msra.mxu0 %v445
    %566 = vmatpush.bf16.msra.mxu0 %v443
    %567 = vmatpush.bf16.msra.mxu0 %v441
    %568 = vmatpush.bf16.msra.mxu0 %v439
    %569 = vmatpush.bf16.msra.mxu0 %v437
    %570 = vmatmul.bf16.gmra.mxu0 %v156
    %v571 = vpop.f32.mrf.mxu0
    %v572 = vadd.f32 %v559, %v571
    %v573 = vpop.f32.mrf.mxu0
    %574 = vdwg.mxu0
    %575 = vmatpush.bf16.msra.mxu0 %v467
    %576 = vmatpush.bf16.msra.mxu0 %v465
    %577 = vmatpush.bf16.msra.mxu0 %v463
    %578 = vmatpush.bf16.msra.mxu0 %v461
    %579 = vmatpush.bf16.msra.mxu0 %v459
    %580 = vmatpush.bf16.msra.mxu0 %v457
    %581 = vmatpush.bf16.msra.mxu0 %v455
    %582 = vmatpush.bf16.msra.mxu0 %v453
    %583 = vmatmul.bf16.gmra.mxu0 %v157
    %v584 = vpop.f32.mrf.mxu0
    %v585 = vadd.f32 %v572, %v584
    %v586 = vpop.f32.mrf.mxu0
    %587 = vdwg.mxu0
    %588 = vmatpush.bf16.msra.mxu0 %v483
    %589 = vmatpush.bf16.msra.mxu0 %v481
    %590 = vmatpush.bf16.msra.mxu0 %v479
    %591 = vmatpush.bf16.msra.mxu0 %v477
    %592 = vmatpush.bf16.msra.mxu0 %v475
    %593 = vmatpush.bf16.msra.mxu0 %v473
    %594 = vmatpush.bf16.msra.mxu0 %v471
    %595 = vmatpush.bf16.msra.mxu0 %v469
    %596 = vmatmul.bf16.gmra.mxu0 %v158
    %v597 = vpop.f32.mrf.mxu0
    %v598 = vadd.f32 %v585, %v597
    %v599 = vpop.f32.mrf.mxu0
    %600 = vdwg.mxu0
    %601 = vmatpush.bf16.msra.mxu0 %v436
    %602 = vmatpush.bf16.msra.mxu0 %v434
    %603 = vmatpush.bf16.msra.mxu0 %v432
    %604 = vmatpush.bf16.msra.mxu0 %v430
    %605 = vmatpush.bf16.msra.mxu0 %v428
    %606 = vmatpush.bf16.msra.mxu0 %v426
    %607 = vmatpush.bf16.msra.mxu0 %v424
    %608 = vmatpush.bf16.msra.mxu0 %v422
    %609 = vmatmul.bf16.gmra.mxu0 %v155
    %v610 = vpop.f32.mrf.mxu0
    %v611 = vadd.f32 %v226, %v610
    %v612 = vpop.f32.mrf.mxu0
    %613 = vdwg.mxu0
    %614 = vmatpush.bf16.msra.mxu0 %v452
    %615 = vmatpush.bf16.msra.mxu0 %v450
    %616 = vmatpush.bf16.msra.mxu0 %v448
    %617 = vmatpush.bf16.msra.mxu0 %v446
    %618 = vmatpush.bf16.msra.mxu0 %v444
    %619 = vmatpush.bf16.msra.mxu0 %v442
    %620 = vmatpush.bf16.msra.mxu0 %v440
    %621 = vmatpush.bf16.msra.mxu0 %v438
    %622 = vmatmul.bf16.gmra.mxu0 %v156
    %v623 = vpop.f32.mrf.mxu0
    %v624 = vadd.f32 %v611, %v623
    %v625 = vpop.f32.mrf.mxu0
    %626 = vdwg.mxu0
    %627 = vmatpush.bf16.msra.mxu0 %v468
    %628 = vmatpush.bf16.msra.mxu0 %v466
    %629 = vmatpush.bf16.msra.mxu0 %v464
    %630 = vmatpush.bf16.msra.mxu0 %v462
    %631 = vmatpush.bf16.msra.mxu0 %v460
    %632 = vmatpush.bf16.msra.mxu0 %v458
    %633 = vmatpush.bf16.msra.mxu0 %v456
    %634 = vmatpush.bf16.msra.mxu0 %v454
    %635 = vmatmul.bf16.gmra.mxu0 %v157
    %v636 = vpop.f32.mrf.mxu0
    %v637 = vadd.f32 %v624, %v636
    %v638 = vpop.f32.mrf.mxu0
    %639 = vdwg.mxu0
    %640 = vmatpush.bf16.msra.mxu0 %v484
    %641 = vmatpush.bf16.msra.mxu0 %v482
    %642 = vmatpush.bf16.msra.mxu0 %v480
    %643 = vmatpush.bf16.msra.mxu0 %v478
    %644 = vmatpush.bf16.msra.mxu0 %v476
    %645 = vmatpush.bf16.msra.mxu0 %v474
    %646 = vmatpush.bf16.msra.mxu0 %v472
    %647 = vmatpush.bf16.msra.mxu0 %v470
    %648 = vmatmul.bf16.gmra.mxu0 %v158
    %v649 = vpop.f32.mrf.mxu0
    %v650 = vadd.f32 %v637, %v649
    %v651 = vpop.f32.mrf.mxu0
    %652 = vdwg.mxu0
    %v653 = vmax.f32 %v598, 0.0
    %v654 = vmax.f32 %v650, 0.0
    %v655 = vpack.c.bf16 %v653, %v653
    %v656 = vpack.c.bf16 %v654, %v654
    %v657 = vld [vmem:[%s5] sm:$0xf]
    %v658 = vld [vmem:[%s5 + $0x4] sm:$0xf]
    %v659 = vld [vmem:[%s5 + $0x8] sm:$0xf]
    %v660 = vld [vmem:[%s5 + $0xc] sm:$0xf]
    %v661 = vld [vmem:[%s5 + $0x10] sm:$0xf]
    %v662 = vld [vmem:[%s5 + $0x14] sm:$0xf]
    %v663 = vld [vmem:[%s5 + $0x18] sm:$0xf]
    %v664 = vld [vmem:[%s5 + $0x1c] sm:$0xf]
    %v665 = vld [vmem:[%s5 + $0x20] sm:$0xf]
    %v666 = vld [vmem:[%s5 + $0x24] sm:$0xf]
    %v667 = vld [vmem:[%s5 + $0x28] sm:$0xf]
    %v668 = vld [vmem:[%s5 + $0x2c] sm:$0xf]
    %v669 = vld [vmem:[%s5 + $0x30] sm:$0xf]
    %v670 = vld [vmem:[%s5 + $0x34] sm:$0xf]
    %v671 = vld [vmem:[%s5 + $0x38] sm:$0xf]
    %v672 = vld [vmem:[%s5 + $0x3c] sm:$0xf]
    %v673 = vld [vmem:[%s5 + $0x40] sm:$0xf]
    %v674 = vld [vmem:[%s5 + $0x44] sm:$0xf]
    %v675 = vld [vmem:[%s5 + $0x48] sm:$0xf]
    %v676 = vld [vmem:[%s5 + $0x4c] sm:$0xf]
    %v677 = vld [vmem:[%s5 + $0x50] sm:$0xf]
    %v678 = vld [vmem:[%s5 + $0x54] sm:$0xf]
    %v679 = vld [vmem:[%s5 + $0x58] sm:$0xf]
    %v680 = vld [vmem:[%s5 + $0x5c] sm:$0xf]
    %v681 = vld [vmem:[%s5 + $0x60] sm:$0xf]
    %v682 = vld [vmem:[%s5 + $0x64] sm:$0xf]
    %v683 = vld [vmem:[%s5 + $0x68] sm:$0xf]
    %v684 = vld [vmem:[%s5 + $0x6c] sm:$0xf]
    %v685 = vld [vmem:[%s5 + $0x70] sm:$0xf]
    %v686 = vld [vmem:[%s5 + $0x74] sm:$0xf]
    %v687 = vld [vmem:[%s5 + $0x78] sm:$0xf]
    %v688 = vld [vmem:[%s5 + $0x7c] sm:$0xf]
    %v689 = vld [vmem:[%s6] sm:$0x1]
    %v691 = vperm.slane %v689, 0
    %v725 = vunpack.c.l.b16 %v657
    %v726 = vunpack.c.l.b16 %v658
    %v727 = vunpack.c.l.b16 %v659
    %v728 = vunpack.c.l.b16 %v660
    %v729 = vunpack.c.l.b16 %v661
    %v730 = vunpack.c.l.b16 %v662
    %v731 = vunpack.c.l.b16 %v663
    %v732 = vunpack.c.l.b16 %v664
    %v733 = vunpack.c.l.b16 %v665
    %v734 = vunpack.c.l.b16 %v666
    %v735 = vunpack.c.l.b16 %v667
    %v736 = vunpack.c.l.b16 %v668
    %v737 = vunpack.c.l.b16 %v669
    %v738 = vunpack.c.l.b16 %v670
    %v739 = vunpack.c.l.b16 %v671
    %v740 = vunpack.c.l.b16 %v672
    %v741 = vunpack.c.l.b16 %v673
    %v742 = vunpack.c.l.b16 %v674
    %v743 = vunpack.c.l.b16 %v675
    %v744 = vunpack.c.l.b16 %v676
    %v745 = vunpack.c.l.b16 %v677
    %v746 = vunpack.c.l.b16 %v678
    %v747 = vunpack.c.l.b16 %v679
    %v748 = vunpack.c.l.b16 %v680
    %v749 = vunpack.c.l.b16 %v681
    %v750 = vunpack.c.l.b16 %v682
    %v751 = vunpack.c.l.b16 %v683
    %v752 = vunpack.c.l.b16 %v684
    %v753 = vunpack.c.l.b16 %v685
    %v754 = vunpack.c.l.b16 %v686
    %v755 = vunpack.c.l.b16 %v687
    %v756 = vunpack.c.l.b16 %v688
    %v757 = vpack.c.b16 %v726, %v725
    %v758 = vpack.c.b16 %v728, %v727
    %v759 = vpack.c.b16 %v730, %v729
    %v760 = vpack.c.b16 %v732, %v731
    %v761 = vpack.c.b16 %v734, %v733
    %v762 = vpack.c.b16 %v736, %v735
    %v763 = vpack.c.b16 %v738, %v737
    %v764 = vpack.c.b16 %v740, %v739
    %v765 = vpack.c.b16 %v742, %v741
    %v766 = vpack.c.b16 %v744, %v743
    %v767 = vpack.c.b16 %v746, %v745
    %v768 = vpack.c.b16 %v748, %v747
    %v769 = vpack.c.b16 %v750, %v749
    %v770 = vpack.c.b16 %v752, %v751
    %v771 = vpack.c.b16 %v754, %v753
    %v772 = vpack.c.b16 %v756, %v755
    %789 = vmatpush.bf16.msra.mxu0 %v764
    %790 = vmatpush.bf16.msra.mxu0 %v763
    %791 = vmatpush.bf16.msra.mxu0 %v762
    %792 = vmatpush.bf16.msra.mxu0 %v761
    %793 = vmatpush.bf16.msra.mxu0 %v760
    %794 = vmatpush.bf16.msra.mxu0 %v759
    %795 = vmatpush.bf16.msra.mxu0 %v758
    %796 = vmatpush.bf16.msra.mxu0 %v757
    %797 = vmatmul.bf16.gmra.mxu0 %v655
    %v798 = vpop.f32.mrf.mxu0
    %v799 = vadd.f32 %v691, %v798
    %v800 = vpop.f32.mrf.mxu0
    %801 = vdwg.mxu0
    %802 = vmatpush.bf16.msra.mxu0 %v772
    %803 = vmatpush.bf16.msra.mxu0 %v771
    %804 = vmatpush.bf16.msra.mxu0 %v770
    %805 = vmatpush.bf16.msra.mxu0 %v769
    %806 = vmatpush.bf16.msra.mxu0 %v768
    %807 = vmatpush.bf16.msra.mxu0 %v767
    %808 = vmatpush.bf16.msra.mxu0 %v766
    %809 = vmatpush.bf16.msra.mxu0 %v765
    %810 = vmatmul.bf16.gmra.mxu0 %v656
    %v811 = vpop.f32.mrf.mxu0
    %v812 = vadd.f32 %v799, %v811
    %v813 = vpop.f32.mrf.mxu0
    %814 = vdwg.mxu0
    %v815 = vmax.f32 %v812, 0.0
    %v816 = vld [vmem:[%s7] sm:$0x1]
    %v818 = vperm.slane %v816, 0
    %v820 = vmul.f32 %v815, %v818
    %821 = vadd.xlane.f32.xlu0 %v820
    %v822 = vpop.xlane.xlu0 %821
    %v823 = vld [vmem:[#allocation2] sm:$0x1]
    %v825 = vperm.slane %v823, 0
    %v827 = vadd.f32 %v822, %v825
    %828 = vxpose.xlu0.b32.start [1/16] %v827, 128
    %829 = vxpose.xlu0.b32.cont [2/16] 0.0, 128
    %830 = vxpose.xlu0.b32.cont [3/16] 0.0, 128
    %831 = vxpose.xlu0.b32.cont [4/16] 0.0, 128
    %832 = vxpose.xlu0.b32.cont [5/16] 0.0, 128
    %833 = vxpose.xlu0.b32.cont [6/16] 0.0, 128
    %834 = vxpose.xlu0.b32.cont [7/16] 0.0, 128
    %835 = vxpose.xlu0.b32.cont [8/16] 0.0, 128
    %836 = vxpose.xlu0.b32.cont [9/16] 0.0, 128
    %837 = vxpose.xlu0.b32.cont [10/16] 0.0, 128
    %838 = vxpose.xlu0.b32.cont [11/16] 0.0, 128
    %839 = vxpose.xlu0.b32.cont [12/16] 0.0, 128
    %840 = vxpose.xlu0.b32.cont [13/16] 0.0, 128
    %841 = vxpose.xlu0.b32.cont [14/16] 0.0, 128
    %842 = vxpose.xlu0.b32.cont [15/16] 0.0, 128
    %843 = vxpose.xlu0.b32.end [16/16] 0.0, 128
    %v844 = vpop.trf.xlu0
    %v845 = vpop.trf.xlu0
    %v846 = vpop.trf.xlu0
    %v847 = vpop.trf.xlu0
    %v848 = vpop.trf.xlu0
    %v849 = vpop.trf.xlu0
    %v850 = vpop.trf.xlu0
    %v851 = vpop.trf.xlu0
    %v852 = vpop.trf.xlu0
    %v853 = vpop.trf.xlu0
    %v854 = vpop.trf.xlu0
    %v855 = vpop.trf.xlu0
    %v856 = vpop.trf.xlu0
    %v857 = vpop.trf.xlu0
    %v858 = vpop.trf.xlu0
    %v859 = vpop.trf.xlu0
    %vm860 = vcmask 57344
    %861 = vst.msk [vmem:[#allocation3] sm:$0x1] %vm860, %v844
    // Predicated region
    $region38: #{deep_critic_forward.1} parent=1 // pred_check
      _
    $region39: #{deep_critic_forward.1} parent=1 // pred_check_branch
      %863 = sbr.rel (0) target = $region41
    $region40: #{deep_critic_forward.1} parent=1 // pred_region
      %865 = vsyncadd [#allocation4], 0
      %s867 = sshll.u32 [#allocation3], 4
      %s868 = int_to_ptr.vmem [resolvable:$true] %s867
      %s869 = sshll.u32 %s9, 4
      %s870 = int_to_ptr.hbm [resolvable:$true] %s869
      %872 = dma.vmem_to_hbm [thread:$0]  %s868, 16, %s870, [#allocation4]
    $region41: #{deep_critic_forward.1} parent=1 // pred_fallthru
      _
    // Predicated region
    $region42: #{deep_critic_forward.1} parent=1 // pred_check
      _
    $region43: #{deep_critic_forward.1} parent=1 // pred_check_branch
      %874 = sbr.rel (0) target = $region45
    $region44: #{deep_critic_forward.1} parent=1 // pred_region
      %876 = dma.done [#allocation4], 16
    $region45: #{deep_critic_forward.1} parent=1 // pred_fallthru
      _
    %877 = vsyncpa [#allocation4], 1

</llo_original>
